<compile_context>
chip_gen: v7x
topology: tpu7x:2x2x1
jax: 0.10.0
libtpu: 0.0.40
codegen_flags: <defaults>
</compile_context>

<pallas_src>
import jax
import jax.numpy as jnp
from jax import lax
from jax.experimental import pallas as pl
from jax.experimental.pallas import tpu as pltpu


_VMEM_LIMIT_BYTES = 32 * 1024 * 1024       # safe scoped limit on v5e / v6e / v7x
_FUSED_MAX_TENSOR_BYTES = 8 * 1024 * 1024  # in + out resident ~16 MiB << 32 MiB budget
_TILE_TARGET_BYTES = 2 * 1024 * 1024       # ~2 MiB blocks for the tiled fallback


# ------------------------------------------------------------------ kernels

def _fused_kernel(wb_ref,    # SMEM (3,): w_avg, w_max, bias
                  x_ref,     # VMEM (B, C, N)
                  out_ref):  # VMEM (B, C, N)
    """Whole-tensor-resident single pass: attention + global standardization."""
    x = x_ref[...]
    avg = jnp.mean(x, axis=1, keepdims=True)                  # (B, 1, N) sublane reduce
    mx = jnp.max(x, axis=1, keepdims=True)                    # (B, 1, N)
    z = wb_ref[0] * avg + wb_ref[1] * mx + wb_ref[2]          # 1x1 conv over [avg; max]
    att = 1.0 / (1.0 + jnp.exp(-z))                           # sigmoid (exp -> EUP)
    out = x * att                                             # broadcast over channels
    n = out.size                                              # static
    mean = jnp.mean(out, keepdims=True)                       # (1, 1, 1)
    centered = out - mean
    var = jnp.sum(centered * centered, keepdims=True) / (n - 1)   # unbiased, centered
    out_ref[...] = centered * lax.rsqrt(var)


def _stats_kernel(wb_ref,      # SMEM (3,)
                  x_ref,       # VMEM (Bblk, C, N)
                  stats_ref):  # VMEM (1, 1, 2): [block mean, block M2]
    """Tiled pass 1: per-block attention-output stats only (no out writeback)."""
    x = x_ref[...]
    avg = jnp.mean(x, axis=1, keepdims=True)
    mx = jnp.max(x, axis=1, keepdims=True)
    z = wb_ref[0] * avg + wb_ref[1] * mx + wb_ref[2]
    att = 1.0 / (1.0 + jnp.exp(-z))
    out = x * att
    bmean = jnp.mean(out, keepdims=True)                      # (1, 1, 1)
    centered = out - bmean
    bm2 = jnp.sum(centered * centered, keepdims=True)         # (1, 1, 1)
    stats_ref[:, :, 0:1] = bmean                              # both stats packed into one
    stats_ref[:, :, 1:2] = bm2                                #   tiny output block


def _apply_kernel(s_ref,     # SMEM (5,): w_avg, w_max, bias, global mean, global inv_std
                  x_ref,     # VMEM (Bblk, C, N)
                  out_ref):  # VMEM (Bblk, C, N)
    """Tiled pass 2: recompute att (hidden under DMA) and write normalized output."""
    x = x_ref[...]
    avg = jnp.mean(x, axis=1, keepdims=True)
    mx = jnp.max(x, axis=1, keepdims=True)
    z = s_ref[0] * avg + s_ref[1] * mx + s_ref[2]
    att = 1.0 / (1.0 + jnp.exp(-z))
    out_ref[...] = (x * att - s_ref[3]) * s_ref[4]


# ------------------------------------------------------------------ wrappers

def _fused_call(wb, x3):
    B, C, N = x3.shape
    full = pl.BlockSpec((B, C, N), lambda i: (0, 0, 0))
    return pl.pallas_call(
        _fused_kernel,
        out_shape=jax.ShapeDtypeStruct((B, C, N), jnp.float32),
        grid_spec=pltpu.PrefetchScalarGridSpec(
            num_scalar_prefetch=0,
            grid=(1,),
            in_specs=[pl.BlockSpec(memory_space=pltpu.MemorySpace.SMEM), full],
            out_specs=full),
        compiler_params=pltpu.CompilerParams(
            dimension_semantics=("arbitrary",),
            vmem_limit_bytes=_VMEM_LIMIT_BYTES),
    )(wb, x3)


def _pick_block_batches(B, per_batch_bytes):
    """Largest divisor of B whose block stays near the ~2 MiB sweet spot."""
    cap = max(1, _TILE_TARGET_BYTES // max(per_batch_bytes, 1))
    best = 1
    for d in range(1, B + 1):
        if B % d == 0 and d <= cap:
            best = d
    return best


def _tiled_call(wb, x3, block_batches=None):
    B, C, N = x3.shape
    if block_batches is None:
        block_batches = _pick_block_batches(B, C * N * 4)
    assert B % block_batches == 0, (B, block_batches)
    nblk = B // block_batches

    xblk = pl.BlockSpec((block_batches, C, N), lambda i: (i, 0, 0))
    sblk = pl.BlockSpec((1, 1, 2), lambda i: (i, 0, 0))
    smem = pl.BlockSpec(memory_space=pltpu.MemorySpace.SMEM)
    cparams = pltpu.CompilerParams(dimension_semantics=("parallel",),
                                   vmem_limit_bytes=_VMEM_LIMIT_BYTES)

    # Pass 1: per-block (mean, M2) partials only -- no attention-output round trip.
    stats = pl.pallas_call(
        _stats_kernel,
        out_shape=jax.ShapeDtypeStruct((nblk, 1, 2), jnp.float32),
        grid_spec=pltpu.PrefetchScalarGridSpec(
            num_scalar_prefetch=0, grid=(nblk,),
            in_specs=[smem, xblk], out_specs=sblk),
        compiler_params=cparams,
    )(wb, x3)

    # Chan's parallel-variance combine over equal-size blocks (numerically stable).
    n_b = block_batches * C * N
    n = B * C * N
    bmean = stats[:, 0, 0]
    bm2 = stats[:, 0, 1]
    gmean = jnp.mean(bmean)                                    # equal-count blocks
    gm2 = jnp.sum(bm2) + n_b * jnp.sum((bmean - gmean) ** 2)
    inv_std = lax.rsqrt(gm2 / (n - 1))                         # torch.std default: unbiased
    s = jnp.concatenate([wb, jnp.stack([gmean, inv_std])]).astype(jnp.float32)  # (5,)

    # Pass 2: re-read x, recompute att, write the normalized output.
    return pl.pallas_call(
        _apply_kernel,
        out_shape=jax.ShapeDtypeStruct((B, C, N), jnp.float32),
        grid_spec=pltpu.PrefetchScalarGridSpec(
            num_scalar_prefetch=0, grid=(nblk,),
            in_specs=[smem, xblk], out_specs=xblk),
        compiler_params=cparams,
    )(s, x3)


def spatial_attention(x, params, *, block_batches=None, force_tiled=False):
    """x: (B, C, H, W) float32 -> (B, C, H, W) float32."""
    B, C, H, W = x.shape
    N = H * W
    x3 = x.reshape(B, C, N).astype(jnp.float32)                # pure reshape, no transpose
    wb = jnp.concatenate([params["w"].reshape(-1),
                          params["b"].reshape(-1)]).astype(jnp.float32)   # (3,)

    if not force_tiled and B * C * N * 4 <= _FUSED_MAX_TENSOR_BYTES:
        out = _fused_call(wb, x3)          # one HBM read + one write, one launch
    else:
        out = _tiled_call(wb, x3, block_batches)
    return out.reshape(B, C, H, W)


# ------------------------------------------------------------------ test harness

def make_params(key):
    """Deterministic synthetic params matching nn.Conv2d(2, 1, kernel_size=1)."""
    kw, kb = jax.random.split(key)
    return {
        # conv1 weight (1, 2, 1, 1) flattened to (2,): [w_avg, w_max]; bias (1,)
        "w": (0.5 * jax.random.normal(kw, (2,))).astype(jnp.float32),
        "b": (0.5 * jax.random.normal(kb, (1,))).astype(jnp.float32),
    }


def reference(x, params):
    """Pure-JAX reference of the same forward pass (for validation)."""
    avg = jnp.mean(x, axis=1, keepdims=True)
    mx = jnp.max(x, axis=1, keepdims=True)
    z = params["w"][0] * avg + params["w"][1] * mx + params["b"][0]
    att = 1.0 / (1.0 + jnp.exp(-z))
    out = x * att
    return (out - jnp.mean(out)) / jnp.std(out, ddof=1)   # torch.std default: unbiased


if __name__ == "__main__":
    B, C, H, W = 2, 4, 16, 16

    key = jax.random.PRNGKey(0)
    kx, kp = jax.random.split(key)
    x = jax.random.normal(kx, (B, C, H, W), dtype=jnp.float32)
    params = make_params(kp)

    y_ref = reference(x, params)

    # Primary path at this shape: fully fused single-pass kernel (tensor VMEM-resident).
    y = jax.block_until_ready(jax.jit(spatial_attention)(x, params))
    assert y.shape == (B, C, H, W), y.shape
    assert jnp.allclose(y, y_ref, atol=1e-4, rtol=1e-4), float(jnp.max(jnp.abs(y - y_ref)))

    # Also exercise the tiled two-pass fallback (the path large tensors take), forcing a
    # 2-step parallel grid so the block/stat plumbing and Chan combine are validated too.
    tiled_fn = jax.jit(
        lambda xx, pp: spatial_attention(xx, pp, block_batches=1, force_tiled=True))
    y2 = jax.block_until_ready(tiled_fn(x, params))
    assert jnp.allclose(y2, y_ref, atol=1e-4, rtol=1e-4), float(jnp.max(jnp.abs(y2 - y_ref)))

    print("KERNEL_OK")
</pallas_src>

<mosaic_0001>
module attributes {stable_mosaic.version = 11 : i64} {
  func.func @_fused_kernel(%arg0: i32, %arg1: memref<3xf32, #tpu.memory_space<smem>>, %arg2: memref<2x4x256xf32, #tpu.memory_space<vmem>>, %arg3: memref<2x4x256xf32, #tpu.memory_space<vmem>>) attributes {dimension_semantics = [#tpu.dimension_semantics<arbitrary>], iteration_bounds = array<i64: 1>, scalar_prefetch = 0 : i64, scratch_operands = 0 : i64, tpu.core_type = #tpu.core_type<tc>, window_params = [{transform_indices = @transform_0, window_bounds = array<i64: 3>}, {pipeline_mode = #tpu.pipeline_mode<synchronous>, transform_indices = @transform_1, window_bounds = array<i64: 2, 4, 256>}, {pipeline_mode = #tpu.pipeline_mode<synchronous>, transform_indices = @transform_2, window_bounds = array<i64: 2, 4, 256>}]} {
    %c0 = arith.constant 0 : index
    %c0_0 = arith.constant 0 : index
    %c0_1 = arith.constant 0 : index
    %0 = vector.load %arg2[%c0, %c0_0, %c0_1] : memref<2x4x256xf32, #tpu.memory_space<vmem>>, vector<2x4x256xf32>
    %cst = arith.constant dense<0.000000e+00> : vector<2x256xf32>
    %1 = vector.multi_reduction <add>, %0, %cst [1] : vector<2x4x256xf32> to vector<2x256xf32>
    %2 = vector.shape_cast %1 : vector<2x256xf32> to vector<2x1x256xf32>
    %cst_2 = arith.constant 4.000000e+00 : f32
    %3 = vector.broadcast %cst_2 : f32 to vector<2x1x256xf32>
    %4 = arith.divf %2, %3 : vector<2x1x256xf32>
    %cst_3 = arith.constant dense<0xFF800000> : vector<2x256xf32>
    %5 = vector.multi_reduction <maximumf>, %0, %cst_3 [1] : vector<2x4x256xf32> to vector<2x256xf32>
    %6 = vector.shape_cast %5 : vector<2x256xf32> to vector<2x1x256xf32>
    %c0_4 = arith.constant 0 : index
    %7 = memref.load %arg1[%c0_4] : memref<3xf32, #tpu.memory_space<smem>>
    %8 = vector.broadcast %7 : f32 to vector<2x1x256xf32>
    %9 = arith.mulf %8, %4 : vector<2x1x256xf32>
    %c1 = arith.constant 1 : index
    %10 = memref.load %arg1[%c1] : memref<3xf32, #tpu.memory_space<smem>>
    %11 = vector.broadcast %10 : f32 to vector<2x1x256xf32>
    %12 = arith.mulf %11, %6 : vector<2x1x256xf32>
    %13 = arith.addf %9, %12 : vector<2x1x256xf32>
    %c2 = arith.constant 2 : index
    %14 = memref.load %arg1[%c2] : memref<3xf32, #tpu.memory_space<smem>>
    %15 = vector.broadcast %14 : f32 to vector<2x1x256xf32>
    %16 = arith.addf %13, %15 : vector<2x1x256xf32>
    %cst_5 = arith.constant 0.000000e+00 : f32
    %17 = vector.broadcast %cst_5 : f32 to vector<2x1x256xf32>
    %18 = arith.subf %17, %16 : vector<2x1x256xf32>
    %19 = math.exp %18 : vector<2x1x256xf32>
    %cst_6 = arith.constant 1.000000e+00 : f32
    %20 = vector.broadcast %cst_6 : f32 to vector<2x1x256xf32>
    %21 = arith.addf %20, %19 : vector<2x1x256xf32>
    %cst_7 = arith.constant 1.000000e+00 : f32
    %22 = vector.broadcast %cst_7 : f32 to vector<2x1x256xf32>
    %23 = arith.divf %22, %21 : vector<2x1x256xf32>
    %24 = vector.broadcast %23 : vector<2x1x256xf32> to vector<2x4x256xf32>
    %25 = arith.mulf %0, %24 : vector<2x4x256xf32>
    %26 = vector.shape_cast %25 : vector<2x4x256xf32> to vector<1x2x4x256xf32>
    %cst_8 = arith.constant dense<0.000000e+00> : vector<1xf32>
    %27 = vector.multi_reduction <add>, %26, %cst_8 [1, 2, 3] : vector<1x2x4x256xf32> to vector<1xf32>
    %28 = vector.shape_cast %27 : vector<1xf32> to vector<1x1x1x1xf32>
    %29 = vector.extract %28[0, 0, 0, 0] : f32 from vector<1x1x1x1xf32>
    %30 = vector.broadcast %29 : f32 to vector<1x1x1xf32>
    %cst_9 = arith.constant 2.048000e+03 : f32
    %31 = vector.broadcast %cst_9 : f32 to vector<1x1x1xf32>
    %32 = arith.divf %30, %31 : vector<1x1x1xf32>
    %33 = vector.broadcast %32 : vector<1x1x1xf32> to vector<2x4x256xf32>
    %34 = arith.subf %25, %33 : vector<2x4x256xf32>
    %35 = arith.mulf %34, %34 : vector<2x4x256xf32>
    %36 = vector.shape_cast %35 : vector<2x4x256xf32> to vector<1x2x4x256xf32>
    %cst_10 = arith.constant dense<0.000000e+00> : vector<1xf32>
    %37 = vector.multi_reduction <add>, %36, %cst_10 [1, 2, 3] : vector<1x2x4x256xf32> to vector<1xf32>
    %38 = vector.shape_cast %37 : vector<1xf32> to vector<1x1x1x1xf32>
    %39 = vector.extract %38[0, 0, 0, 0] : f32 from vector<1x1x1x1xf32>
    %40 = vector.broadcast %39 : f32 to vector<1x1x1xf32>
    %cst_11 = arith.constant 2.047000e+03 : f32
    %41 = vector.broadcast %cst_11 : f32 to vector<1x1x1xf32>
    %42 = arith.divf %40, %41 : vector<1x1x1xf32>
    %43 = math.rsqrt %42 : vector<1x1x1xf32>
    %44 = vector.broadcast %43 : vector<1x1x1xf32> to vector<2x4x256xf32>
    %45 = arith.mulf %34, %44 : vector<2x4x256xf32>
    %c0_12 = arith.constant 0 : index
    %c0_13 = arith.constant 0 : index
    %c0_14 = arith.constant 0 : index
    %46 = vector.load %arg3[%c0_12, %c0_13, %c0_14] : memref<2x4x256xf32, #tpu.memory_space<vmem>>, vector<2x4x256xf32>
    tpu.vector_store %arg3[%c0_12, %c0_13, %c0_14], %45 {strides = array<i32>} : memref<2x4x256xf32, #tpu.memory_space<vmem>>, vector<2x4x256xf32>,
    return
  }
  func.func @transform_0(%arg0: i32) -> i32 {
    %c0_i32 = arith.constant 0 : i32
    %c0_i32_0 = arith.constant 0 : i32
    return %c0_i32 : i32
  }
  func.func @transform_1(%arg0: i32) -> (i32, i32, i32) {
    %c0_i32 = arith.constant 0 : i32
    %c0_i32_0 = arith.constant 0 : i32
    %c0_i32_1 = arith.constant 0 : i32
    %c0_i32_2 = arith.constant 0 : i32
    return %c0_i32, %c0_i32_0, %c0_i32_1 : i32, i32, i32
  }
  func.func @transform_2(%arg0: i32) -> (i32, i32, i32) {
    %c0_i32 = arith.constant 0 : i32
    %c0_i32_0 = arith.constant 0 : i32
    %c0_i32_1 = arith.constant 0 : i32
    %c0_i32_2 = arith.constant 0 : i32
    return %c0_i32, %c0_i32_0, %c0_i32_1 : i32, i32, i32
  }
}

</mosaic_0001>

<llo_original>
// kernel: spatial_attention.1
$region0: #{spatial_attention.1}
  #allocation0 [shape = 'u32[]', space=smem, size = 0x4, offset = 0x4, fixed_abs, tag = 'smem constant byte address 0x4 - core index']
  #allocation1 [shape = 'u32[144,128]{1,0:T(1,128)}', space=vmem, size = 0x12000, scoped, tag = 'internal scratch']
  %s0 = inlined_call_operand.vmem [shape: f32[3], index: 0, kind: input, shape index: {}]
  %s1 = inlined_call_operand.vmem [shape: f32[2,4,256], index: 1, kind: input, shape index: {}]
  %s2 = inlined_call_operand.vmem [shape: f32[2,4,256], index: 2, kind: output, shape index: {}]
  %s3 = sld [smem:[#allocation0]]
  $region22: #{spatial_attention.1} parent=0
    _
  %s5 = ssub.s32 1, %s3
  %s6 = scalar_select 0, %s5, %s3
  $region1: #{spatial_attention.1} parent=0
    #allocation2 [shape = 'u8[512]{0}', space=smem, size = 0x200, scoped, tag = 'input window, operand 0, single buffered']
    #allocation3 [shape = 's32[1]{0}', space=sflag, size = 0x4, scoped, tag = 'scoped memory for spatial_attention.1']
    %7 = vsyncpa [#allocation3], 0
    // Predicated region
    $region2: #{spatial_attention.1} parent=1 // pred_check
      _
    $region3: #{spatial_attention.1} parent=1 // pred_check_branch
      %9 = sbr.rel (0) target = $region5
    $region4: #{spatial_attention.1} parent=1 // pred_region
      %s11 = ssub.s32 16, 16
      %12 = vsyncadd [#allocation3], %s11
      %s14 = sshll.u32 %s0, 4
      %s15 = int_to_ptr.vmem [resolvable:$true] %s14
      %17 = dma.vmem_to_smem %s15, 16, [#allocation2], [#allocation3]
    $region5: #{spatial_attention.1} parent=1 // pred_fallthru
      _
    // Predicated region
    $region6: #{spatial_attention.1} parent=1 // pred_check
      _
    $region7: #{spatial_attention.1} parent=1 // pred_check_branch
      %19 = sbr.rel (0) target = $region9
    $region8: #{spatial_attention.1} parent=1 // pred_region
      _
    $region9: #{spatial_attention.1} parent=1 // pred_fallthru
      _
    // Predicated region
    $region10: #{spatial_attention.1} parent=1 // pred_check
      _
    $region11: #{spatial_attention.1} parent=1 // pred_check_branch
      %21 = sbr.rel (0) target = $region13
    $region12: #{spatial_attention.1} parent=1 // pred_region
      %22 = dma.done [#allocation3], 16
    $region13: #{spatial_attention.1} parent=1 // pred_fallthru
      _
    %23 = sfence
    %v24 = vld [vmem:[%s1] sm:$0xff]
    %v25 = vld [vmem:[%s1 + $0x8] sm:$0xff]
    %v28 = vcombine.high %v24, %v24
    %v29 = vcombine.high %v25, %v25
    %vm32 = vcmask 1043456
    %v33 = vsel %vm32, %v24, 0.0
    %v34 = vrot.slane %v33, 4
    %v35 = vadd.f32 %v33, %v34
    %v36 = vrot.slane %v35, 2
    %v37 = vadd.f32 %v35, %v36
    %v38 = vrot.slane %v37, 1
    %v39 = vadd.f32 %v37, %v38
    %v40 = vsel %vm32, %v28, 0.0
    %v41 = vrot.slane %v40, 4
    %v42 = vadd.f32 %v40, %v41
    %v43 = vrot.slane %v42, 2
    %v44 = vadd.f32 %v42, %v43
    %v45 = vrot.slane %v44, 1
    %v46 = vadd.f32 %v44, %v45
    %v47 = vsel %vm32, %v25, 0.0
    %v48 = vrot.slane %v47, 4
    %v49 = vadd.f32 %v47, %v48
    %v50 = vrot.slane %v49, 2
    %v51 = vadd.f32 %v49, %v50
    %v52 = vrot.slane %v51, 1
    %v53 = vadd.f32 %v51, %v52
    %v54 = vsel %vm32, %v29, 0.0
    %v55 = vrot.slane %v54, 4
    %v56 = vadd.f32 %v54, %v55
    %v57 = vrot.slane %v56, 2
    %v58 = vadd.f32 %v56, %v57
    %v59 = vrot.slane %v58, 1
    %v60 = vadd.f32 %v58, %v59
    %v61 = vrcp.pop 4.0
    %v62 = vmul.f32 %v39, %v61
    %v63 = vmul.f32 %v46, %v61
    %v64 = vmul.f32 %v53, %v61
    %v65 = vmul.f32 %v60, %v61
    %v66 = vsel %vm32, %v24, -inf
    %v67 = vrot.slane %v66, 4
    %v68 = vmax.f32 %v66, %v67
    %v69 = vrot.slane %v68, 2
    %v70 = vmax.f32 %v68, %v69
    %v71 = vrot.slane %v70, 1
    %v72 = vmax.f32 %v70, %v71
    %v73 = vsel %vm32, %v28, -inf
    %v74 = vrot.slane %v73, 4
    %v75 = vmax.f32 %v73, %v74
    %v76 = vrot.slane %v75, 2
    %v77 = vmax.f32 %v75, %v76
    %v78 = vrot.slane %v77, 1
    %v79 = vmax.f32 %v77, %v78
    %v80 = vsel %vm32, %v25, -inf
    %v81 = vrot.slane %v80, 4
    %v82 = vmax.f32 %v80, %v81
    %v83 = vrot.slane %v82, 2
    %v84 = vmax.f32 %v82, %v83
    %v85 = vrot.slane %v84, 1
    %v86 = vmax.f32 %v84, %v85
    %v87 = vsel %vm32, %v29, -inf
    %v88 = vrot.slane %v87, 4
    %v89 = vmax.f32 %v87, %v88
    %v90 = vrot.slane %v89, 2
    %v91 = vmax.f32 %v89, %v90
    %v92 = vrot.slane %v91, 1
    %v93 = vmax.f32 %v91, %v92
    %s94 = sld [smem:[#allocation2]]
    %v95 = vstv %s94
    %v96 = vmul.f32 %v95, %v62
    %v97 = vmul.f32 %v95, %v63
    %v98 = vmul.f32 %v95, %v64
    %v99 = vmul.f32 %v95, %v65
    %s100 = sld [smem:[#allocation2 + $0x1]]
    %v101 = vstv %s100
    %v102 = vmul.f32 %v101, %v72
    %v103 = vmul.f32 %v101, %v79
    %v104 = vmul.f32 %v101, %v86
    %v105 = vmul.f32 %v101, %v93
    %v106 = vadd.f32 %v96, %v102
    %v107 = vadd.f32 %v97, %v103
    %v108 = vadd.f32 %v98, %v104
    %v109 = vadd.f32 %v99, %v105
    %s110 = sld [smem:[#allocation2 + $0x2]]
    %v111 = vstv %s110
    %v112 = vadd.f32 %v106, %v111
    %v113 = vadd.f32 %v107, %v111
    %v114 = vadd.f32 %v108, %v111
    %v115 = vadd.f32 %v109, %v111
    %v116 = vsub.f32 0.0, %v112
    %v117 = vsub.f32 0.0, %v113
    %v118 = vsub.f32 0.0, %v114
    %v119 = vsub.f32 0.0, %v115
    %v120 = vmul.f32 %v116, 1.442695
    %v121 = vpow.pop %v120
    %v122 = vmul.f32 %v117, 1.442695
    %v123 = vpow.pop %v122
    %v124 = vmul.f32 %v118, 1.442695
    %v125 = vpow.pop %v124
    %v126 = vmul.f32 %v119, 1.442695
    %v127 = vpow.pop %v126
    %v128 = vadd.f32 %v121, 1.0
    %v129 = vadd.f32 %v123, 1.0
    %v130 = vadd.f32 %v125, 1.0
    %v131 = vadd.f32 %v127, 1.0
    %v132 = vrcp.pop %v128
    %v133 = vmul.f32 1.0, %v132
    %v134 = vrcp.pop %v129
    %v135 = vmul.f32 1.0, %v134
    %v136 = vrcp.pop %v130
    %v137 = vmul.f32 1.0, %v136
    %v138 = vrcp.pop %v131
    %v139 = vmul.f32 1.0, %v138
    %v144 = vcombine.low %v133, %v135
    %v145 = vcombine.low %v137, %v139
    %v148 = vmul.f32 %v24, %v144
    %v149 = vmul.f32 %v25, %v145
    %v152 = vcombine.high %v148, %v148
    %v153 = vcombine.high %v149, %v149
    %v156 = vsel %vm32, %v148, 0.0
    %v157 = vsel %vm32, %v152, 0.0
    %v158 = vadd.f32 %v156, %v157
    %v159 = vsel %vm32, %v149, 0.0
    %v160 = vadd.f32 %v158, %v159
    %v161 = vsel %vm32, %v153, 0.0
    %v162 = vadd.f32 %v160, %v161
    %163 = vadd.xlane.f32.xlu0 %v162
    %v164 = vpop.xlane.xlu0 %163
    %v165 = vrot.slane %v164, 4
    %v166 = vadd.f32 %v164, %v165
    %v167 = vrot.slane %v166, 2
    %v168 = vadd.f32 %v166, %v167
    %v169 = vrot.slane %v168, 1
    %v170 = vadd.f32 %v168, %v169
    %s171 = vtos %v170
    %v172 = vstv %s171
    %v173 = vrcp.pop 2048.0
    %v174 = vmul.f32 %v172, %v173
    %v175 = vsub.f32 %v148, %v174
    %v176 = vsub.f32 %v149, %v174
    %v177 = vmul.f32 %v175, %v175
    %v178 = vmul.f32 %v176, %v176
    %v181 = vcombine.high %v177, %v177
    %v182 = vcombine.high %v178, %v178
    %v185 = vsel %vm32, %v177, 0.0
    %v186 = vsel %vm32, %v181, 0.0
    %v187 = vadd.f32 %v185, %v186
    %v188 = vsel %vm32, %v178, 0.0
    %v189 = vadd.f32 %v187, %v188
    %v190 = vsel %vm32, %v182, 0.0
    %v191 = vadd.f32 %v189, %v190
    %192 = vadd.xlane.f32.xlu0 %v191
    %v193 = vpop.xlane.xlu0 %192
    %v194 = vrot.slane %v193, 4
    %v195 = vadd.f32 %v193, %v194
    %v196 = vrot.slane %v195, 2
    %v197 = vadd.f32 %v195, %v196
    %v198 = vrot.slane %v197, 1
    %v199 = vadd.f32 %v197, %v198
    %s200 = vtos %v199
    %v201 = vstv %s200
    %v202 = vrcp.pop 2047.0
    %v203 = vmul.f32 %v201, %v202
    %v204 = vrsqrt.pop %v203
    %v205 = vmul.f32 %v175, %v204
    %v206 = vmul.f32 %v176, %v204
    %207 = vst [vmem:[%s2] sm:$0xff] %v205
    %208 = vst [vmem:[%s2 + $0x8] sm:$0xff] %v206
    // Predicated region
    $region14: #{spatial_attention.1} parent=1 // pred_check
      _
    $region15: #{spatial_attention.1} parent=1 // pred_check_branch
      %210 = sbr.rel (0) target = $region17
    $region16: #{spatial_attention.1} parent=1 // pred_region
      _
    $region17: #{spatial_attention.1} parent=1 // pred_fallthru
      _
    // Predicated region
    $region18: #{spatial_attention.1} parent=1 // pred_check
      _
    $region19: #{spatial_attention.1} parent=1 // pred_check_branch
      %212 = sbr.rel (0) target = $region21
    $region20: #{spatial_attention.1} parent=1 // pred_region
      _
    $region21: #{spatial_attention.1} parent=1 // pred_fallthru
      _
    %213 = vsyncpa [#allocation3], 1

</llo_original>
